<compile_context>
chip_gen: v7x
topology: tpu7x:2x2x1
jax: 0.10.0
libtpu: 0.0.40
codegen_flags: <defaults>
</compile_context>

<pallas_src>
import numpy as np
import jax
import jax.numpy as jnp
from jax.experimental import pallas as pl
from jax.experimental.pallas import tpu as pltpu


def _copy_kernel(x_ref, o_ref):
    # Identity copy of the current (row_tile, C) lane-dense block.
    o_ref[...] = x_ref[...]


def _sublane_quantum(itemsize):
    # Sublane tiling requirement per dtype width: f32 -> 8, bf16 -> 16, i8 -> 32.
    return 8 * max(1, 4 // int(itemsize))


def _largest_divisor_leq(n, cap, step_down_from=None):
    """Largest divisor of n that is <= cap (linear scan, n small in practice)."""
    start = min(cap, n) if step_down_from is None else step_down_from
    for c in range(start, 0, -1):
        if n % c == 0:
            return c
    return 1


def _pick_row_tile(R, C, itemsize, target_block_bytes, sublane):
    """Largest row tile dividing R, under the byte budget, multiple of the
    sublane quantum (or the full extent R, which is always legal)."""
    max_rt = max(1, target_block_bytes // max(1, C * itemsize))
    for rt in range(min(R, max_rt), 0, -1):
        if R % rt == 0 and (rt % sublane == 0 or rt == R):
            return rt
    return R


def _pick_lane_dense_tiling(total, itemsize, *, max_lanes=2048,
                            target_block_bytes=2 << 20):
    """Pick a lane-dense 2-D view (R, C) of the flat buffer plus a row tile.

    Preference order for C:
      1. largest multiple-of-128 divisor of `total` (<= max_lanes): unmasked vst
      2. largest divisor of `total` (<= max_lanes): mostly lane-dense
    Returns (R, C, row_tile), or None if even (2) gives a degenerate C == 1
    with a huge R (caller then uses the natural (rows, dim) view).
    """
    sublane = _sublane_quantum(itemsize)

    # 1) multiple-of-128 divisor.
    C = 0
    cand = (min(max_lanes, total) // 128) * 128
    while cand >= 128:
        if total % cand == 0:
            C = cand
            break
        cand -= 128

    # 2) any divisor <= max_lanes (still better than a tiny raw last dim).
    if C == 0:
        C = _largest_divisor_leq(total, max_lanes)
        if C < 128 and total > max_lanes:
            # Degenerate (e.g. total prime): let caller use (rows, dim).
            return None

    R = total // C
    row_tile = _pick_row_tile(R, C, itemsize, target_block_bytes, sublane)
    return R, C, row_tile


def pallas_reshape(x, shape, *, materialize=True, target_block_bytes=2 << 20):
    """Equivalent of Reshape(shape)(x): (..., dim) -> (..., *shape)."""
    shape = tuple(int(s) for s in shape)
    dim = int(np.prod(shape)) if shape else 1
    assert x.shape[-1] == dim, f"last dim {x.shape[-1]} != prod(shape) {dim}"

    lead = x.shape[:-1]
    out_shape = (*lead, *shape)

    # A contiguous reshape is metadata-only in XLA; this is the optimal path
    # when no materialized copy is actually required.
    if not materialize:
        return x.reshape(out_shape)

    total = int(np.prod(x.shape))
    if total == 0:
        return x.reshape(out_shape)
    itemsize = jnp.dtype(x.dtype).itemsize
    sublane = _sublane_quantum(itemsize)

    tiling = _pick_lane_dense_tiling(
        total, itemsize, target_block_bytes=target_block_bytes)
    if tiling is not None:
        R, C, row_tile = tiling
    else:
        # Last resort: natural (rows, dim) view with a full-width last dim
        # (block equal to the full extent is always legal).
        rows = max(1, total // dim)
        R, C = rows, dim
        row_tile = _pick_row_tile(rows, dim, itemsize, target_block_bytes,
                                  sublane)

    x2d = x.reshape(R, C)           # metadata-only: buffer is contiguous
    grid = (R // row_tile,)

    out2d = pl.pallas_call(
        _copy_kernel,
        out_shape=jax.ShapeDtypeStruct((R, C), x.dtype),
        grid_spec=pltpu.PrefetchScalarGridSpec(
            num_scalar_prefetch=0,
            grid=grid,
            in_specs=[pl.BlockSpec((row_tile, C), lambda i: (i, 0))],
            out_specs=pl.BlockSpec((row_tile, C), lambda i: (i, 0)),
        ),
        compiler_params=pltpu.CompilerParams(
            # Parallel row axis: lets Mosaic shard grid steps across the two
            # TensorCores on v7x; neutral on v5e/v6e.
            dimension_semantics=("parallel",),
            # Blocks are <= ~2 MiB; 1 in + 1 out, each double-buffered,
            # <= ~8 MiB — comfortably under this limit on every generation.
            vmem_limit_bytes=32 * 1024 * 1024,
        ),
        # Pure memory-bound op: read + write of the whole tensor.
        cost_estimate=pl.CostEstimate(
            flops=0, transcendentals=0,
            bytes_accessed=2 * total * itemsize),
        # Reuse the input HBM buffer for the output when the input is donated
        # (identity copy in place); XLA inserts a copy otherwise, so this is
        # always safe.
        input_output_aliases={0: 0},
    )(x2d)

    # Metadata-only view back to (..., *shape) (matches torch .view semantics).
    return out2d.reshape(out_shape)


if __name__ == "__main__":
    root = jax.random.PRNGKey(0)
    k0, k1, k2, k3 = jax.random.split(root, 4)

    # Primary case, matching the module: Reshape(shape=(4, 8)), x: (2, 8, 32).
    target_shape = (4, 8)
    dim = int(np.prod(target_shape))
    x = jax.random.normal(k0, (2, 8, dim), dtype=jnp.float32)
    y = pallas_reshape(x, target_shape)
    jax.block_until_ready(y)
    ref = x.reshape(2, 8, *target_shape)
    assert y.shape == (2, 8, 4, 8), y.shape
    assert y.dtype == x.dtype
    np.testing.assert_allclose(np.asarray(y), np.asarray(ref), rtol=0, atol=0)

    # Secondary case: exercises the lane-dense (R, C>=128) multi-row tiling.
    x2 = jax.random.normal(k1, (16, 64, 128), dtype=jnp.float32)
    y2 = pallas_reshape(x2, (2, 64))
    jax.block_until_ready(y2)
    np.testing.assert_allclose(
        np.asarray(y2), np.asarray(x2.reshape(16, 64, 2, 64)), rtol=0, atol=0)

    # Third case: total has no multiple-of-128 factor -> largest-divisor
    # fallback (360 -> single (1, 360) lane-dense block).
    x3 = jax.random.normal(k2, (3, 5, 24), dtype=jnp.float32)
    y3 = pallas_reshape(x3, (4, 6))
    jax.block_until_ready(y3)
    np.testing.assert_allclose(
        np.asarray(y3), np.asarray(x3.reshape(3, 5, 4, 6)), rtol=0, atol=0)

    # Fourth case: bf16 input (exercises the 16-sublane row-tile quantum).
    x4 = jax.random.normal(k3, (4, 32, 256), dtype=jnp.bfloat16)
    y4 = pallas_reshape(x4, (8, 32))
    jax.block_until_ready(y4)
    np.testing.assert_allclose(
        np.asarray(y4.astype(jnp.float32)),
        np.asarray(x4.reshape(4, 32, 8, 32).astype(jnp.float32)),
        rtol=0, atol=0)

    print("KERNEL_OK")
</pallas_src>

<mosaic_0001>
module attributes {stable_mosaic.version = 11 : i64} {
  func.func @_copy_kernel(%arg0: i32, %arg1: memref<1x512xf32, #tpu.memory_space<vmem>>, %arg2: memref<1x512xf32, #tpu.memory_space<vmem>>) attributes {dimension_semantics = [#tpu.dimension_semantics<parallel>], iteration_bounds = array<i64: 1>, scalar_prefetch = 0 : i64, scratch_operands = 0 : i64, tpu.core_type = #tpu.core_type<tc>, window_params = [{transform_indices = @transform_0, window_bounds = array<i64: 1, 512>}, {transform_indices = @transform_1, window_bounds = array<i64: 1, 512>}]} {
    %c0 = arith.constant 0 : index
    %c0_0 = arith.constant 0 : index
    %0 = vector.load %arg1[%c0, %c0_0] : memref<1x512xf32, #tpu.memory_space<vmem>>, vector<1x512xf32>
    %c0_1 = arith.constant 0 : index
    %c0_2 = arith.constant 0 : index
    %1 = vector.load %arg2[%c0_1, %c0_2] : memref<1x512xf32, #tpu.memory_space<vmem>>, vector<1x512xf32>
    tpu.vector_store %arg2[%c0_1, %c0_2], %0 {strides = array<i32>} : memref<1x512xf32, #tpu.memory_space<vmem>>, vector<1x512xf32>,
    return
  }
  func.func @transform_0(%arg0: i32) -> (i32, i32) {
    %c0_i32 = arith.constant 0 : i32
    %c0_i32_0 = arith.constant 0 : i32
    return %arg0, %c0_i32 : i32, i32
  }
  func.func @transform_1(%arg0: i32) -> (i32, i32) {
    %c0_i32 = arith.constant 0 : i32
    %c0_i32_0 = arith.constant 0 : i32
    return %arg0, %c0_i32 : i32, i32
  }
}

</mosaic_0001>

<llo_original>
// kernel: tpu_custom_call.1
$region0: #{tpu_custom_call.1}
  #allocation0 [shape = 'u32[]', space=smem, size = 0x4, offset = 0x4, fixed_abs, tag = 'smem constant byte address 0x4 - core index']
  #allocation1 [shape = 'u32[144,128]{1,0:T(1,128)}', space=vmem, size = 0x12000, scoped, tag = 'internal scratch']
  %s0 = inlined_call_operand.hbm [shape: f32[1,512], index: 0, kind: input, shape index: {}, may-alias: {0,1}]
  %s1 = inlined_call_operand.hbm [shape: f32[1,512], index: 1, kind: output, shape index: {}, may-alias: {0,1}]
  %s2 = sld [smem:[#allocation0]]
  $region18: #{tpu_custom_call.1} parent=0
    _
  %s4 = ssub.s32 1, %s2
  %s5 = scalar_select 0, %s4, %s2
  $region1: #{tpu_custom_call.1} parent=0
    #allocation2 [shape = 'u8[2048]{0}', space=vmem, size = 0x800, scoped, tag = 'input window, operand 0, single buffered']
    #allocation3 [shape = 's32[1]{0}', space=sflag, size = 0x4, scoped, tag = 'scoped memory for tpu_custom_call.1']
    #allocation4 [shape = 's32[1]{0}', space=sflag, size = 0x4, scoped, tag = 'scoped memory for tpu_custom_call.1']
    #allocation5 [shape = 'u8[2048]{0}', space=vmem, size = 0x800, scoped, tag = 'output window, operand 0, single buffered']
    %6 = vsyncpa [#allocation3], 0
    %7 = vsyncpa [#allocation4], 0
    // Predicated region
    $region2: #{tpu_custom_call.1} parent=1 // pred_check
      _
    $region3: #{tpu_custom_call.1} parent=1 // pred_check_branch
      %9 = sbr.rel (0) target = $region5
    $region4: #{tpu_custom_call.1} parent=1 // pred_region
      %s11 = ssub.s32 64, 64
      %12 = vsyncadd [#allocation3], %s11
      %s14 = sshll.u32 [#allocation2], 4
      %s15 = int_to_ptr.vmem [resolvable:$true] %s14
      %17 = dma.hbm_to_vmem [thread:$0]  %s0, 64, %s15, [#allocation3]
    $region5: #{tpu_custom_call.1} parent=1 // pred_fallthru
      _
    // Predicated region
    $region6: #{tpu_custom_call.1} parent=1 // pred_check
      _
    $region7: #{tpu_custom_call.1} parent=1 // pred_check_branch
      %19 = sbr.rel (0) target = $region9
    $region8: #{tpu_custom_call.1} parent=1 // pred_region
      %20 = dma.done [#allocation3], 64
    $region9: #{tpu_custom_call.1} parent=1 // pred_fallthru
      _
    %v21 = vld [vmem:[#allocation2] sm:$0xf]
    %v22 = vlaneseq
    %vm23 = vcmp.ge.s32.totalorder %v22, 0
    %vm24 = vcmp.lt.s32.totalorder %v22, 512
    %vm25 = vmand %vm23, %vm24
    %26 = vst.msk [vmem:[#allocation5] sm:$0xf] %vm25, %v21
    // Predicated region
    $region10: #{tpu_custom_call.1} parent=1 // pred_check
      _
    $region11: #{tpu_custom_call.1} parent=1 // pred_check_branch
      %28 = sbr.rel (0) target = $region13
    $region12: #{tpu_custom_call.1} parent=1 // pred_region
      %s30 = ssub.s32 64, 64
      %31 = vsyncadd [#allocation4], %s30
      %s33 = sshll.u32 [#allocation5], 4
      %s34 = int_to_ptr.vmem [resolvable:$true] %s33
      %36 = dma.vmem_to_hbm [thread:$0]  %s34, 64, %s1, [#allocation4]
    $region13: #{tpu_custom_call.1} parent=1 // pred_fallthru
      _
    // Predicated region
    $region14: #{tpu_custom_call.1} parent=1 // pred_check
      _
    $region15: #{tpu_custom_call.1} parent=1 // pred_check_branch
      %38 = sbr.rel (0) target = $region17
    $region16: #{tpu_custom_call.1} parent=1 // pred_region
      %39 = dma.done [#allocation4], 64
    $region17: #{tpu_custom_call.1} parent=1 // pred_fallthru
      _
    %40 = vsyncpa [#allocation3], 1
    %41 = vsyncpa [#allocation4], 1

</llo_original>
